<compile_context>
chip_gen: v6e
topology: v6e:2x2x1
jax: 0.10.0
libtpu: 0.0.40
codegen_flags: <defaults>
</compile_context>

<pallas_src>
import jax
import jax.numpy as jnp
from jax.experimental import pallas as pl
from jax.experimental.pallas import tpu as pltpu

_LANE = 1024        # lane-dense last dim, multiple of 128
_BLOCK_ROWS = 512   # rows per tile (multiple of 8)


def _make_normalize_kernel(scale, bias):
    """Kernel computing x * scale + bias  (== (x - mean) / std)."""
    def kernel(x_ref, o_ref):
        x = x_ref[...]
        if x.dtype != jnp.float32:
            # Keep the math in f32 (v5e VPU has no bf16 arithmetic).
            x = x.astype(jnp.float32)
        o_ref[...] = (x * scale + bias).astype(o_ref.dtype)
    return kernel


def normalize(x, mean, std):
    """(x - mean) / std elementwise. x: any-shape float array; mean/std: Python scalars."""
    orig_shape = x.shape
    total = x.size

    # Fold static hyperparameters into constants (divide done once at trace time).
    scale = float(1.0 / float(std))
    bias = float(-float(mean) / float(std))

    # Flatten to a lane-dense (rows, 1024) slab; pad any remainder.
    flat = x.reshape(-1)
    padded = pl.cdiv(total, _LANE) * _LANE
    if padded != total:
        flat = jnp.pad(flat, (0, padded - total))
    rows = padded // _LANE
    x2d = flat.reshape(rows, _LANE)

    # Tile rows; if the whole slab fits one tile, use the full extent
    # (block == full array dim satisfies the (8,128) rule for tiny inputs).
    br = _BLOCK_ROWS if rows > _BLOCK_ROWS else rows
    grid = (pl.cdiv(rows, br),)

    out2d = pl.pallas_call(
        _make_normalize_kernel(scale, bias),
        out_shape=jax.ShapeDtypeStruct((rows, _LANE), x.dtype),
        grid=grid,
        in_specs=[pl.BlockSpec((br, _LANE), lambda i: (i, 0))],
        out_specs=pl.BlockSpec((br, _LANE), lambda i: (i, 0)),
        compiler_params=pltpu.CompilerParams(
            dimension_semantics=("parallel",)),
    )(x2d)

    out_flat = out2d.reshape(-1)
    if padded != total:
        out_flat = out_flat[:total]
    return out_flat.reshape(orig_shape)


if __name__ == "__main__":
    key = jax.random.PRNGKey(0)
    mean = 0.2860
    std = 0.3530

    # Case 1: NCHW input whose element count is an exact multiple of the lane width.
    x1 = jax.random.uniform(key, (2, 4, 16, 16), dtype=jnp.float32)
    out1 = jax.block_until_ready(normalize(x1, mean, std))
    ref1 = (x1 - mean) / std
    assert out1.shape == x1.shape and out1.dtype == x1.dtype
    assert jnp.allclose(out1, ref1, atol=1e-5, rtol=1e-5)

    # Case 2: element count NOT a multiple of 1024 -> exercises the padding path.
    k2 = jax.random.PRNGKey(1)
    x2 = jax.random.uniform(k2, (2, 3, 28, 28), dtype=jnp.float32)
    out2 = jax.block_until_ready(normalize(x2, mean, std))
    ref2 = (x2 - mean) / std
    assert out2.shape == x2.shape and out2.dtype == x2.dtype
    assert jnp.allclose(out2, ref2, atol=1e-5, rtol=1e-5)

    # Case 3: bf16 input (f32 math inside the kernel, bf16 store).
    k3 = jax.random.PRNGKey(2)
    x3 = jax.random.uniform(k3, (2, 1, 28, 28), dtype=jnp.bfloat16)
    out3 = jax.block_until_ready(normalize(x3, mean, std))
    ref3 = ((x3.astype(jnp.float32) - mean) / std).astype(jnp.bfloat16)
    assert out3.shape == x3.shape and out3.dtype == x3.dtype
    assert jnp.allclose(out3.astype(jnp.float32), ref3.astype(jnp.float32),
                        atol=2e-2, rtol=2e-2)

    print("KERNEL_OK")
</pallas_src>

<mosaic_0001>
module attributes {stable_mosaic.version = 11 : i64} {
  func.func @kernel(%arg0: i32, %arg1: memref<2x1024xf32, #tpu.memory_space<vmem>>, %arg2: memref<2x1024xf32, #tpu.memory_space<vmem>>) attributes {dimension_semantics = [#tpu.dimension_semantics<parallel>], iteration_bounds = array<i64: 1>, scalar_prefetch = 0 : i64, scratch_operands = 0 : i64, tpu.core_type = #tpu.core_type<tc>, window_params = [{transform_indices = @transform_0, window_bounds = array<i64: 2, 1024>}, {transform_indices = @transform_1, window_bounds = array<i64: 2, 1024>}]} {
    %c0 = arith.constant 0 : index
    %c0_0 = arith.constant 0 : index
    %0 = vector.load %arg1[%c0, %c0_0] : memref<2x1024xf32, #tpu.memory_space<vmem>>, vector<2x1024xf32>
    %cst = arith.constant 2.83286119 : f32
    %1 = vector.broadcast %cst : f32 to vector<2x1024xf32>
    %2 = arith.mulf %0, %1 : vector<2x1024xf32>
    %cst_1 = arith.constant -0.810198307 : f32
    %3 = vector.broadcast %cst_1 : f32 to vector<2x1024xf32>
    %4 = arith.addf %2, %3 : vector<2x1024xf32>
    %c0_2 = arith.constant 0 : index
    %c0_3 = arith.constant 0 : index
    %5 = vector.load %arg2[%c0_2, %c0_3] : memref<2x1024xf32, #tpu.memory_space<vmem>>, vector<2x1024xf32>
    tpu.vector_store %arg2[%c0_2, %c0_3], %4 {strides = array<i32>} : memref<2x1024xf32, #tpu.memory_space<vmem>>, vector<2x1024xf32>,
    return
  }
  func.func @transform_0(%arg0: i32) -> (i32, i32) {
    %c0_i32 = arith.constant 0 : i32
    %c0_i32_0 = arith.constant 0 : i32
    return %arg0, %c0_i32 : i32, i32
  }
  func.func @transform_1(%arg0: i32) -> (i32, i32) {
    %c0_i32 = arith.constant 0 : i32
    %c0_i32_0 = arith.constant 0 : i32
    return %arg0, %c0_i32 : i32, i32
  }
}

</mosaic_0001>

<llo_original>
// kernel: tpu_custom_call.1
$region0: #{tpu_custom_call.1}
  #allocation0 [shape = 'u32[]', space=smem, size = 0x4, offset = 0x4, fixed_abs, tag = 'smem constant byte address 0x4 - core index']
  #allocation1 [shape = 'u32[144,128]{1,0:T(1,128)}', space=vmem, size = 0x12000, scoped, tag = 'internal scratch']
  %s0 = inlined_call_operand.hbm [shape: f32[2,1024], index: 0, kind: input, shape index: {}]
  %s1 = inlined_call_operand.hbm [shape: f32[2,1024], index: 1, kind: output, shape index: {}]
  %s2 = sld [smem:[#allocation0]]
  $region18: #{tpu_custom_call.1} parent=0
    _
  %s4 = ssub.s32 1, %s2
  %s5 = scalar_select 0, %s4, %s2
  $region1: #{tpu_custom_call.1} parent=0
    #allocation2 [shape = 'u8[8192]{0}', space=vmem, size = 0x2000, scoped, tag = 'input window, operand 0, single buffered']
    #allocation3 [shape = 's32[1]{0}', space=sflag, size = 0x4, scoped, tag = 'scoped memory for tpu_custom_call.1']
    #allocation4 [shape = 's32[1]{0}', space=sflag, size = 0x4, scoped, tag = 'scoped memory for tpu_custom_call.1']
    #allocation5 [shape = 'u8[8192]{0}', space=vmem, size = 0x2000, scoped, tag = 'output window, operand 0, single buffered']
    %6 = vsyncpa [#allocation3], 0
    %7 = vsyncpa [#allocation4], 0
    // Predicated region
    $region2: #{tpu_custom_call.1} parent=1 // pred_check
      _
    $region3: #{tpu_custom_call.1} parent=1 // pred_check_branch
      %9 = sbr.rel (0) target = $region5
    $region4: #{tpu_custom_call.1} parent=1 // pred_region
      %s11 = ssub.s32 256, 256
      %12 = vsyncadd [#allocation3], %s11
      %s14 = sshll.u32 [#allocation2], 4
      %s15 = int_to_ptr.vmem [resolvable:$true] %s14
      %17 = dma.hbm_to_vmem [thread:$0]  %s0, 256, %s15, [#allocation3]
    $region5: #{tpu_custom_call.1} parent=1 // pred_fallthru
      _
    // Predicated region
    $region6: #{tpu_custom_call.1} parent=1 // pred_check
      _
    $region7: #{tpu_custom_call.1} parent=1 // pred_check_branch
      %19 = sbr.rel (0) target = $region9
    $region8: #{tpu_custom_call.1} parent=1 // pred_region
      %20 = dma.done [#allocation3], 256
    $region9: #{tpu_custom_call.1} parent=1 // pred_fallthru
      _
    %v21 = vld [vmem:[#allocation2] sm:$0xff]
    %v22 = vld [vmem:[#allocation2 + $0x8] sm:$0xff]
    %v23 = vmul.f32 %v21, 2.8328612
    %v24 = vmul.f32 %v22, 2.8328612
    %v25 = vadd.f32 %v23, -0.8101983
    %v26 = vadd.f32 %v24, -0.8101983
    %27 = vst [vmem:[#allocation5] sm:$0xff] %v25
    %28 = vst [vmem:[#allocation5 + $0x8] sm:$0xff] %v26
    // Predicated region
    $region10: #{tpu_custom_call.1} parent=1 // pred_check
      _
    $region11: #{tpu_custom_call.1} parent=1 // pred_check_branch
      %30 = sbr.rel (0) target = $region13
    $region12: #{tpu_custom_call.1} parent=1 // pred_region
      %s32 = ssub.s32 256, 256
      %33 = vsyncadd [#allocation4], %s32
      %s35 = sshll.u32 [#allocation5], 4
      %s36 = int_to_ptr.vmem [resolvable:$true] %s35
      %38 = dma.vmem_to_hbm [thread:$0]  %s36, 256, %s1, [#allocation4]
    $region13: #{tpu_custom_call.1} parent=1 // pred_fallthru
      _
    // Predicated region
    $region14: #{tpu_custom_call.1} parent=1 // pred_check
      _
    $region15: #{tpu_custom_call.1} parent=1 // pred_check_branch
      %40 = sbr.rel (0) target = $region17
    $region16: #{tpu_custom_call.1} parent=1 // pred_region
      %41 = dma.done [#allocation4], 256
    $region17: #{tpu_custom_call.1} parent=1 // pred_fallthru
      _
    %42 = vsyncpa [#allocation3], 1
    %43 = vsyncpa [#allocation4], 1

</llo_original>
